<compile_context>
chip_gen: v7x
topology: tpu7x:2x2x1
jax: 0.10.0
libtpu: 0.0.40
codegen_flags: <defaults>
</compile_context>

<pallas_src>
import jax
import jax.numpy as jnp
from jax.experimental import pallas as pl
from jax.experimental.pallas import tpu as pltpu

# ----------------------------- config ---------------------------------------
B = 2                          # real batch
B_PAD = 8                      # padded to a full sublane tile
C, H, W = 4, 16, 16
PATCH = 4
P = (H // PATCH) * (W // PATCH)    # 16 patches
DP = C * PATCH * PATCH             # 64  patch vector dim
D_IMG = 64                         # image encoder hidden ("pooler") dim
S = 8                              # question sequence length
VOCAB = 32
D_Q = 32                           # question encoder hidden ("pooler") dim
HIDDEN = 512                       # Classifier.fc_1 output dim
NUM_LABELS = 16                    # len(mlb.classes_) stand-in
W1_ROWS = D_Q + DP                 # 96 live fc1 contraction rows ([question ; image])
L_PAD = 128                        # lane-dense padded label dim
B_SLAB = 128 + HIDDEN + L_PAD      # packed bias operand width (offsets 0 / 128 / 640)


# ----------------------------- kernel ---------------------------------------
def vqa_kernel(
    mean_patch_ref,   # [B_PAD, DP]       f32  (patch mean, pooled in wrapper)
    q_pooled_ref,     # [B_PAD, D_Q]      f32  (masked-mean token pool from wrapper)
    w_pool_ref,       # [D_Q, D_Q]        f32
    w1_ref,           # [W1_ROWS, HIDDEN] bf16 (rows: [w1_q ; w_patch @ w1_i])
    w2_ref,           # [HIDDEN, L_PAD]   bf16 (labels zero-padded to 128 lanes)
    biases_ref,       # [1, B_SLAB]       f32  ([b_pool pad128 | b1_eff | b2 pad128])
    logits_ref,       # [B_PAD, L_PAD]    f32  (output, lane-dense full-tile store)
):
    f32 = jnp.float32
    bf16 = jnp.bfloat16

    # ---- QuestionEncoder pooler: dense + tanh (tanh -> EUP; f32 elementwise).
    # TODO(synk): real BERT runs a 12-layer transformer and pools the CLS token;
    # this is a mask-weighted mean proxy (pooling itself done in the wrapper).
    b_pool = biases_ref[:, 0:D_Q]                                       # [1, D_Q]
    q_emb = jnp.tanh(
        jnp.dot(q_pooled_ref[...], w_pool_ref[...],
                preferred_element_type=f32) + b_pool)                   # [Bp, D_Q] f32

    # ---- Classifier: cat(question, image) -> fc1 -> ReLU -> (dropout=id) -> fc2.
    # No in-kernel concatenate: two dot-accumulates against static sublane-aligned
    # row slices of the merged fc1 weight.  The image branch (w_patch, b_patch) is
    # folded into w1 / b1 at init, so mean_patch feeds fc1 directly — exact, since
    # the image path is linear up to fc1.
    b1 = biases_ref[:, 128:128 + HIDDEN]                                # [1, HIDDEN]
    h = (jnp.dot(q_emb.astype(bf16), w1_ref[0:D_Q, :],
                 preferred_element_type=f32)
         + jnp.dot(mean_patch_ref[...].astype(bf16), w1_ref[D_Q:W1_ROWS, :],
                   preferred_element_type=f32)
         + b1)                                                          # [Bp, HIDDEN] f32
    h = jnp.maximum(h, 0.0)                                             # ReLU (f32 VPU)

    b2 = biases_ref[:, 128 + HIDDEN:128 + HIDDEN + L_PAD]               # [1, L_PAD]
    logits_ref[...] = (jnp.dot(h.astype(bf16), w2_ref[...],
                               preferred_element_type=f32)
                       + b2)                                            # [Bp, 128] full tile


# ----------------------------- wrapper ---------------------------------------
@jax.jit
def vqa_forward(image, question, question_attention_mask, params):
    """image: [B, C, H, W] f32 (NCHW); question: [B, S] int32; mask: [B, S]."""
    b = image.shape[0]

    # Glue (fused by XLA under this jit): patchify NCHW and mean-pool the
    # patches here, so the kernel only sees a [B, DP] vector per example.
    patches = image.reshape(b, C, H // PATCH, PATCH, W // PATCH, PATCH)
    patches = jnp.transpose(patches, (0, 2, 4, 1, 3, 5)).reshape(b, P, DP)
    mean_patch = jnp.mean(patches, axis=1)                               # [B, DP]

    # Glue: token embedding gather + masked mean pool (clamped denominator so an
    # all-padding row cannot divide by zero).
    tok = params["tok_table"][question]                                  # [B, S, D_Q]
    mask = question_attention_mask.astype(jnp.float32)                   # [B, S]
    denom = jnp.maximum(jnp.sum(mask, axis=1, keepdims=True), 1.0)
    q_pooled = jnp.einsum("bs,bsd->bd", mask / denom, tok)               # [B, D_Q]

    # Pad batch to a full 8-sublane tile (padded rows discarded below).
    mean_patch_p = jnp.pad(mean_patch, ((0, B_PAD - b), (0, 0)))
    q_pooled_p = jnp.pad(q_pooled, ((0, B_PAD - b), (0, 0)))

    vmem = pl.BlockSpec(memory_space=pltpu.MemorySpace.VMEM)
    # TODO(synk): if this is called per-request at scale, batch requests, add a
    # grid over batch (M tiled to >=128/256) with constant index_maps on w1/w2 so
    # the weights stay VMEM-resident across steps, mark the batch axis "parallel"
    # for v7x's 2 TensorCores, and re-derive tiling for v7x's 64 MiB VMEM when
    # swapping in real BEiT/BERT weights (whole-operand residency will not fit).
    logits_pad = pl.pallas_call(
        vqa_kernel,
        out_shape=jax.ShapeDtypeStruct((B_PAD, L_PAD), jnp.float32),
        in_specs=[vmem] * 6,
        out_specs=vmem,
    )(mean_patch_p, q_pooled_p,
      params["w_pool"], params["w1"], params["w2"], params["biases"])

    return logits_pad[:b, :NUM_LABELS]


# ----------------------------- params ----------------------------------------
def init_params(key):
    ks = jax.random.split(key, 8)
    scale = 0.02
    # ---- "torch-like" parameters -------------------------------------------
    tok_table = scale * jax.random.normal(ks[0], (VOCAB, D_Q), jnp.float32)
    w_patch = scale * jax.random.normal(ks[1], (DP, D_IMG), jnp.float32)
    b_patch = jnp.zeros((1, D_IMG), jnp.float32)
    w_pool = scale * jax.random.normal(ks[2], (D_Q, D_Q), jnp.float32)
    b_pool = jnp.zeros((1, D_Q), jnp.float32)
    # fc_1 weight is [D_Q + D_IMG, HIDDEN]; rows ordered [question ; image]
    # to match torch.cat((question, image), dim=1).
    w1_q = scale * jax.random.normal(ks[3], (D_Q, HIDDEN), jnp.float32)
    w1_i = scale * jax.random.normal(ks[4], (D_IMG, HIDDEN), jnp.float32)
    b1 = jnp.zeros((1, HIDDEN), jnp.float32)
    w2 = scale * jax.random.normal(ks[5], (HIDDEN, NUM_LABELS), jnp.float32)
    b2 = jnp.zeros((1, NUM_LABELS), jnp.float32)

    # ---- pack to kernel-ready form (one-time, off the hot path) ------------
    # Fold the (linear) patch projection into fc1: image rows become
    # w_patch @ w1_i, bias b_patch @ w1_i goes into b1.  Exact.
    w1_img_eff = w_patch @ w1_i                                          # [DP, HIDDEN]
    w1 = jnp.concatenate([w1_q, w1_img_eff], axis=0)                    # [96, HIDDEN]
    b1_eff = b1 + b_patch @ w1_i                                         # [1, HIDDEN]
    # lane-dense padded fc2 weight / bias
    w2_p = jnp.zeros((HIDDEN, L_PAD), jnp.float32).at[:, :NUM_LABELS].set(w2)
    b2_p = jnp.zeros((1, L_PAD), jnp.float32).at[:, :NUM_LABELS].set(b2)
    # all bias vectors packed into one lane-aligned operand (slabs at 0/128/640)
    b_pool_p = jnp.zeros((1, 128), jnp.float32).at[:, :D_Q].set(b_pool)
    biases = jnp.concatenate([b_pool_p, b1_eff, b2_p], axis=-1)          # [1, 768]

    params = {
        "tok_table": tok_table,
        "w_pool": w_pool,
        "w1": w1.astype(jnp.bfloat16),      # bf16 MXU weights, f32 accumulation
        "w2": w2_p.astype(jnp.bfloat16),
        "biases": biases,                   # f32 biases (added post-accumulate)
    }
    # raw f32 copies kept only for the pure-JAX reference check (not used on hot path)
    raw = {
        "tok_table": tok_table, "w_patch": w_patch, "b_patch": b_patch,
        "w_pool": w_pool, "b_pool": b_pool,
        "w1_full": jnp.concatenate([w1_q, w1_i], axis=0), "b1": b1,
        "w2": w2, "b2": b2,
    }
    return params, raw


def reference_forward(image, question, question_attention_mask, raw):
    """Pure-JAX f32 reference of the same forward semantics."""
    b = image.shape[0]
    patches = image.reshape(b, C, H // PATCH, PATCH, W // PATCH, PATCH)
    patches = jnp.transpose(patches, (0, 2, 4, 1, 3, 5)).reshape(b, P, DP)
    image_embedding = jnp.mean(patches @ raw["w_patch"] + raw["b_patch"], axis=1)
    tok = raw["tok_table"][question]
    m = question_attention_mask.astype(jnp.float32)
    denom = jnp.maximum(jnp.sum(m, axis=1, keepdims=True), 1.0)
    pooled = jnp.sum(tok * (m / denom)[:, :, None], axis=1)
    q_emb = jnp.tanh(pooled @ raw["w_pool"] + raw["b_pool"])
    fused = jnp.concatenate([q_emb, image_embedding], axis=-1)
    h = jnp.maximum(fused @ raw["w1_full"] + raw["b1"], 0.0)
    return h @ raw["w2"] + raw["b2"]


if __name__ == "__main__":
    key = jax.random.PRNGKey(0)
    k_img, k_q, k_params = jax.random.split(key, 3)

    image = jax.random.normal(k_img, (B, C, H, W), jnp.float32)          # NCHW
    question = jax.random.randint(k_q, (B, S), 0, VOCAB, jnp.int32)
    # first 6 tokens are text, last 2 are padding
    question_attention_mask = jnp.concatenate(
        [jnp.ones((B, 6), jnp.float32), jnp.zeros((B, 2), jnp.float32)], axis=1)

    params, raw = init_params(k_params)

    logits = vqa_forward(image, question, question_attention_mask, params)
    logits = jax.block_until_ready(logits)

    assert logits.shape == (B, NUM_LABELS) and logits.dtype == jnp.float32
    assert bool(jnp.all(jnp.isfinite(logits)))

    # Loose-tolerance check vs. an all-f32 reference (bf16 fc1/fc2 weights).
    ref = reference_forward(image, question, question_attention_mask, raw)
    max_err = float(jnp.max(jnp.abs(logits - ref)))
    assert max_err < 1e-2, f"kernel/reference mismatch: max_err={max_err}"

    print("KERNEL_OK")
</pallas_src>

<mosaic_0001>
module attributes {stable_mosaic.version = 11 : i64} {
  func.func @vqa_kernel(%arg0: memref<8x64xf32, #tpu.memory_space<vmem>>, %arg1: memref<8x32xf32, #tpu.memory_space<vmem>>, %arg2: memref<32x32xf32, #tpu.memory_space<vmem>>, %arg3: memref<96x512xbf16, #tpu.memory_space<vmem>>, %arg4: memref<512x128xbf16, #tpu.memory_space<vmem>>, %arg5: memref<1x768xf32, #tpu.memory_space<vmem>>, %arg6: memref<8x128xf32, #tpu.memory_space<vmem>>) attributes {dimension_semantics = [], scalar_prefetch = 0 : i64, scratch_operands = 0 : i64, tpu.core_type = #tpu.core_type<tc>} {
    %c0 = arith.constant 0 : index
    %c0_0 = arith.constant 0 : index
    %0 = vector.load %arg5[%c0, %c0_0] : memref<1x768xf32, #tpu.memory_space<vmem>>, vector<1x32xf32>
    %c0_1 = arith.constant 0 : index
    %c0_2 = arith.constant 0 : index
    %1 = vector.load %arg1[%c0_1, %c0_2] : memref<8x32xf32, #tpu.memory_space<vmem>>, vector<8x32xf32>
    %c0_3 = arith.constant 0 : index
    %c0_4 = arith.constant 0 : index
    %2 = vector.load %arg2[%c0_3, %c0_4] : memref<32x32xf32, #tpu.memory_space<vmem>>, vector<32x32xf32>
    %cst = arith.constant dense<0.000000e+00> : vector<8x32xf32>
    %3 = tpu.matmul %1, %2, %cst {dimension_numbers = #tpu.dot_dimension_numbers<[1], [0], [0], [1], [0, 0, 1, 1], [], []>} : vector<8x32xf32>, vector<32x32xf32>, vector<8x32xf32> -> vector<8x32xf32>
    %4 = vector.broadcast %0 : vector<1x32xf32> to vector<8x32xf32>
    %5 = arith.addf %3, %4 : vector<8x32xf32>
    %6 = math.tanh %5 : vector<8x32xf32>
    %c0_5 = arith.constant 0 : index
    %c128 = arith.constant 128 : index
    %7 = vector.load %arg5[%c0_5, %c128] : memref<1x768xf32, #tpu.memory_space<vmem>>, vector<1x512xf32>
    %8 = arith.truncf %6 : vector<8x32xf32> to vector<8x32xbf16>
    %c0_6 = arith.constant 0 : index
    %c0_7 = arith.constant 0 : index
    %9 = vector.load %arg3[%c0_6, %c0_7] : memref<96x512xbf16, #tpu.memory_space<vmem>>, vector<32x512xbf16>
    %cst_8 = arith.constant dense<0.000000e+00> : vector<8x512xf32>
    %10 = tpu.matmul %8, %9, %cst_8 {dimension_numbers = #tpu.dot_dimension_numbers<[1], [0], [0], [1], [0, 0, 1, 1], [], []>} : vector<8x32xbf16>, vector<32x512xbf16>, vector<8x512xf32> -> vector<8x512xf32>
    %c0_9 = arith.constant 0 : index
    %c0_10 = arith.constant 0 : index
    %11 = vector.load %arg0[%c0_9, %c0_10] : memref<8x64xf32, #tpu.memory_space<vmem>>, vector<8x64xf32>
    %12 = arith.truncf %11 : vector<8x64xf32> to vector<8x64xbf16>
    %c32 = arith.constant 32 : index
    %c0_11 = arith.constant 0 : index
    %13 = vector.load %arg3[%c32, %c0_11] : memref<96x512xbf16, #tpu.memory_space<vmem>>, vector<64x512xbf16>
    %cst_12 = arith.constant dense<0.000000e+00> : vector<8x512xf32>
    %14 = tpu.matmul %12, %13, %cst_12 {dimension_numbers = #tpu.dot_dimension_numbers<[1], [0], [0], [1], [0, 0, 1, 1], [], []>} : vector<8x64xbf16>, vector<64x512xbf16>, vector<8x512xf32> -> vector<8x512xf32>
    %15 = arith.addf %10, %14 : vector<8x512xf32>
    %16 = vector.broadcast %7 : vector<1x512xf32> to vector<8x512xf32>
    %17 = arith.addf %15, %16 : vector<8x512xf32>
    %cst_13 = arith.constant 0.000000e+00 : f32
    %18 = vector.broadcast %cst_13 : f32 to vector<8x512xf32>
    %19 = arith.maximumf %17, %18 : vector<8x512xf32>
    %c0_14 = arith.constant 0 : index
    %c640 = arith.constant 640 : index
    %20 = vector.load %arg5[%c0_14, %c640] : memref<1x768xf32, #tpu.memory_space<vmem>>, vector<1x128xf32>
    %21 = arith.truncf %19 : vector<8x512xf32> to vector<8x512xbf16>
    %c0_15 = arith.constant 0 : index
    %c0_16 = arith.constant 0 : index
    %22 = vector.load %arg4[%c0_15, %c0_16] : memref<512x128xbf16, #tpu.memory_space<vmem>>, vector<512x128xbf16>
    %cst_17 = arith.constant dense<0.000000e+00> : vector<8x128xf32>
    %23 = tpu.matmul %21, %22, %cst_17 {dimension_numbers = #tpu.dot_dimension_numbers<[1], [0], [0], [1], [0, 0, 1, 1], [], []>} : vector<8x512xbf16>, vector<512x128xbf16>, vector<8x128xf32> -> vector<8x128xf32>
    %24 = vector.broadcast %20 : vector<1x128xf32> to vector<8x128xf32>
    %25 = arith.addf %23, %24 : vector<8x128xf32>
    %c0_18 = arith.constant 0 : index
    %c0_19 = arith.constant 0 : index
    %26 = vector.load %arg6[%c0_18, %c0_19] : memref<8x128xf32, #tpu.memory_space<vmem>>, vector<8x128xf32>
    tpu.vector_store %arg6[%c0_18, %c0_19], %25 {strides = array<i32>} : memref<8x128xf32, #tpu.memory_space<vmem>>, vector<8x128xf32>,
    return
  }
}

</mosaic_0001>

<llo_original>
// kernel: vqa_forward.1
$region0: #{vqa_forward.1}
  #allocation0 [shape = 'u32[]', space=smem, size = 0x4, offset = 0x4, fixed_abs, tag = 'smem constant byte address 0x4 - core index']
  #allocation1 [shape = 'u32[144,128]{1,0:T(1,128)}', space=vmem, size = 0x12000, scoped, tag = 'internal scratch']
  %s0 = inlined_call_operand.vmem [shape: f32[8,64], index: 0, kind: input, shape index: {}]
  %s1 = inlined_call_operand.vmem [shape: f32[8,32], index: 1, kind: input, shape index: {}]
  %s2 = inlined_call_operand.vmem [shape: f32[32,32], index: 2, kind: input, shape index: {}]
  %s3 = inlined_call_operand.vmem [shape: bf16[96,512], index: 3, kind: input, shape index: {}]
  %s4 = inlined_call_operand.vmem [shape: bf16[512,128], index: 4, kind: input, shape index: {}]
  %s5 = inlined_call_operand.vmem [shape: f32[1,768], index: 5, kind: input, shape index: {}]
  %s6 = inlined_call_operand.vmem [shape: f32[8,128], index: 6, kind: output, shape index: {}]
  %s7 = sld [smem:[#allocation0]]
  $region34: #{vqa_forward.1} parent=0
    _
  %s9 = ssub.s32 1, %s7
  %s10 = scalar_select 0, %s9, %s7
  // Predicated region
  $region2: #{vqa_forward.1} parent=0 // pred_check
    _
  $region3: #{vqa_forward.1} parent=0 // pred_check_branch
    %12 = sbr.rel (0) target = $region5
  $region4: #{vqa_forward.1} parent=0 // pred_region
    _
  $region5: #{vqa_forward.1} parent=0 // pred_fallthru
    _
  // Predicated region
  $region6: #{vqa_forward.1} parent=0 // pred_check
    _
  $region7: #{vqa_forward.1} parent=0 // pred_check_branch
    %14 = sbr.rel (0) target = $region9
  $region8: #{vqa_forward.1} parent=0 // pred_region
    _
  $region9: #{vqa_forward.1} parent=0 // pred_fallthru
    _
  // Predicated region
  $region10: #{vqa_forward.1} parent=0 // pred_check
    _
  $region11: #{vqa_forward.1} parent=0 // pred_check_branch
    %16 = sbr.rel (0) target = $region13
  $region12: #{vqa_forward.1} parent=0 // pred_region
    _
  $region13: #{vqa_forward.1} parent=0 // pred_fallthru
    _
  // Predicated region
  $region14: #{vqa_forward.1} parent=0 // pred_check
    _
  $region15: #{vqa_forward.1} parent=0 // pred_check_branch
    %18 = sbr.rel (0) target = $region17
  $region16: #{vqa_forward.1} parent=0 // pred_region
    _
  $region17: #{vqa_forward.1} parent=0 // pred_fallthru
    _
  // Predicated region
  $region18: #{vqa_forward.1} parent=0 // pred_check
    _
  $region19: #{vqa_forward.1} parent=0 // pred_check_branch
    %20 = sbr.rel (0) target = $region21
  $region20: #{vqa_forward.1} parent=0 // pred_region
    _
  $region21: #{vqa_forward.1} parent=0 // pred_fallthru
    _
  // Predicated region
  $region22: #{vqa_forward.1} parent=0 // pred_check
    _
  $region23: #{vqa_forward.1} parent=0 // pred_check_branch
    %22 = sbr.rel (0) target = $region25
  $region24: #{vqa_forward.1} parent=0 // pred_region
    _
  $region25: #{vqa_forward.1} parent=0 // pred_fallthru
    _
  %v24 = vld [vmem:[%s5] sm:$0x1]
  %v25 = vld [vmem:[%s1] sm:$0xff]
  %v26 = vld [vmem:[%s2] sm:$0xff]
  %v27 = vld [vmem:[%s2 + $0x8] sm:$0xff]
  %v28 = vld [vmem:[%s2 + $0x10] sm:$0xff]
  %v29 = vld [vmem:[%s2 + $0x18] sm:$0xff]
  %v31 = vlaneseq
  %v32 = vshrl.u32 %v31, 7
  %v33 = vsub.s32 0, %v32
  %v34 = vrot.slane %v24, %v33
  %vm36 = vcmask 261120
  %v38 = vsel %vm36, %v25, 0
  %40 = vmatprep.subr.mxu0 0.0
  %41 = vmatpush1.msra.mxu0 %v26
  %42 = vmatprep.subr.mxu0 0.0
  %43 = vmatpush1.msra.mxu0 %v27
  %44 = vmatprep.subr.mxu0 0.0
  %45 = vmatpush1.msra.mxu0 %v28
  %46 = vmatprep.subr.mxu0 0.0
  %47 = vmatpush1.msra.mxu0 %v29
  %48 = vmatprep.subr.mxu0 0.0
  %49 = vmatpush1.msra.mxu0 0.0
  %50 = vmatprep.subr.mxu0 0.0
  %51 = vmatpush1.msra.mxu0 0.0
  %52 = vmatprep.subr.mxu0 0.0
  %53 = vmatpush1.msra.mxu0 0.0
  %54 = vmatprep.subr.mxu0 0.0
  %55 = vmatpush1.msra.mxu0 0.0
  %56 = vmatprep.subr.mxu0 0.0
  %57 = vmatpush1.msra.mxu0 0.0
  %58 = vmatprep.subr.mxu0 0.0
  %59 = vmatpush1.msra.mxu0 0.0
  %60 = vmatprep.subr.mxu0 0.0
  %61 = vmatpush1.msra.mxu0 0.0
  %62 = vmatprep.subr.mxu0 0.0
  %63 = vmatpush1.msra.mxu0 0.0
  %64 = vmatprep.subr.mxu0 0.0
  %65 = vmatpush1.msra.mxu0 0.0
  %66 = vmatprep.subr.mxu0 0.0
  %67 = vmatpush1.msra.mxu0 0.0
  %68 = vmatprep.subr.mxu0 0.0
  %69 = vmatpush1.msra.mxu0 0.0
  %70 = vmatprep.subr.mxu0 0.0
  %71 = vmatpush1.msra.mxu0 0.0
  %72 = vmatprep.subr.mxu0 0.0
  %73 = vmatpush1.msra.mxu0 0.0
  %74 = vmatprep.subr.mxu0 0.0
  %75 = vmatpush1.msra.mxu0 0.0
  %76 = vmatprep.subr.mxu0 0.0
  %77 = vmatpush1.msra.mxu0 0.0
  %78 = vmatprep.subr.mxu0 0.0
  %79 = vmatpush1.msra.mxu0 0.0
  %80 = vmatprep.subr.mxu0 0.0
  %81 = vmatpush1.msra.mxu0 0.0
  %82 = vmatprep.subr.mxu0 0.0
  %83 = vmatpush1.msra.mxu0 0.0
  %84 = vmatprep.subr.mxu0 0.0
  %85 = vmatpush1.msra.mxu0 0.0
  %86 = vmatprep.subr.mxu0 0.0
  %87 = vmatpush1.msra.mxu0 0.0
  %88 = vmatprep.subr.mxu0 0.0
  %89 = vmatpush1.msra.mxu0 0.0
  %90 = vmatprep.subr.mxu0 0.0
  %91 = vmatpush1.msra.mxu0 0.0
  %92 = vmatprep.subr.mxu0 0.0
  %93 = vmatpush1.msra.mxu0 0.0
  %94 = vmatprep.subr.mxu0 0.0
  %95 = vmatpush1.msra.mxu0 0.0
  %96 = vmatprep.subr.mxu0 0.0
  %97 = vmatpush1.msra.mxu0 0.0
  %98 = vmatprep.subr.mxu0 0.0
  %99 = vmatpush1.msra.mxu0 0.0
  %100 = vmatprep.subr.mxu0 0.0
  %101 = vmatpush1.msra.mxu0 0.0
  %102 = vmatprep.subr.mxu0 0.0
  %103 = vmatpush1.msra.mxu0 0.0
  %104 = vmatprep.mubr.f32.mxu0 0.0
  %105 = vmatmul.mubr.f32.gmra.mrb[0].mxu0 %v38
  %v106 = vpop.f32.mrb[0].mxu0
  %v107 = vadd.f32 %v34, %v106
  %v108 = vpop.f32.mrb[0].mxu0
  %109 = vdwg.mxu0
  %v110 = vtanh.pop %v107
  %v111 = vld [vmem:[%s5 + $0x1] sm:$0xf]
  %v112 = vpack.c.bf16 %v110, %v110
  %v113 = vld [vmem:[%s3] sm:$0xff]
  %v114 = vld [vmem:[%s3 + $0x8] sm:$0xff]
  %v115 = vld [vmem:[%s3 + $0x10] sm:$0xff]
  %v116 = vld [vmem:[%s3 + $0x18] sm:$0xff]
  %v117 = vld [vmem:[%s3 + $0x20] sm:$0xff]
  %v118 = vld [vmem:[%s3 + $0x28] sm:$0xff]
  %v119 = vld [vmem:[%s3 + $0x30] sm:$0xff]
  %v120 = vld [vmem:[%s3 + $0x38] sm:$0xff]
  %v121 = vld [vmem:[%s0] sm:$0xff]
  %v122 = vpack.c.bf16 %v121, %v121
  %v123 = vld [vmem:[%s3 + $0x40] sm:$0xff]
  %v124 = vld [vmem:[%s3 + $0x48] sm:$0xff]
  %v125 = vld [vmem:[%s3 + $0x50] sm:$0xff]
  %v126 = vld [vmem:[%s3 + $0x58] sm:$0xff]
  %v127 = vld [vmem:[%s3 + $0x60] sm:$0xff]
  %v128 = vld [vmem:[%s3 + $0x68] sm:$0xff]
  %v129 = vld [vmem:[%s3 + $0x70] sm:$0xff]
  %v130 = vld [vmem:[%s3 + $0x78] sm:$0xff]
  %v131 = vld [vmem:[%s3 + $0x80] sm:$0xff]
  %v132 = vld [vmem:[%s3 + $0x88] sm:$0xff]
  %v133 = vld [vmem:[%s3 + $0x90] sm:$0xff]
  %v134 = vld [vmem:[%s3 + $0x98] sm:$0xff]
  %v135 = vld [vmem:[%s3 + $0xa0] sm:$0xff]
  %v136 = vld [vmem:[%s3 + $0xa8] sm:$0xff]
  %v137 = vld [vmem:[%s3 + $0xb0] sm:$0xff]
  %v138 = vld [vmem:[%s3 + $0xb8] sm:$0xff]
  %v155 = vunpack.c.l.b16 %v123
  %v156 = vunpack.c.h.b16 %v123
  %v157 = vunpack.c.l.b16 %v124
  %v158 = vunpack.c.h.b16 %v124
  %v159 = vunpack.c.l.b16 %v125
  %v160 = vunpack.c.h.b16 %v125
  %v161 = vunpack.c.l.b16 %v126
  %v162 = vunpack.c.h.b16 %v126
  %v163 = vunpack.c.l.b16 %v127
  %v164 = vunpack.c.h.b16 %v127
  %v165 = vunpack.c.l.b16 %v128
  %v166 = vunpack.c.h.b16 %v128
  %v167 = vunpack.c.l.b16 %v129
  %v168 = vunpack.c.h.b16 %v129
  %v169 = vunpack.c.l.b16 %v130
  %v170 = vunpack.c.h.b16 %v130
  %v171 = vunpack.c.l.b16 %v131
  %v172 = vunpack.c.h.b16 %v131
  %v173 = vunpack.c.l.b16 %v132
  %v174 = vunpack.c.h.b16 %v132
  %v175 = vunpack.c.l.b16 %v133
  %v176 = vunpack.c.h.b16 %v133
  %v177 = vunpack.c.l.b16 %v134
  %v178 = vunpack.c.h.b16 %v134
  %v179 = vunpack.c.l.b16 %v135
  %v180 = vunpack.c.h.b16 %v135
  %v181 = vunpack.c.l.b16 %v136
  %v182 = vunpack.c.h.b16 %v136
  %v183 = vunpack.c.l.b16 %v137
  %v184 = vunpack.c.h.b16 %v137
  %v185 = vunpack.c.l.b16 %v138
  %v186 = vunpack.c.h.b16 %v138
  %v187 = vpack.c.b16 %v159, %v155
  %v188 = vpack.c.b16 %v160, %v156
  %v189 = vpack.c.b16 %v161, %v157
  %v190 = vpack.c.b16 %v162, %v158
  %v191 = vpack.c.b16 %v167, %v163
  %v192 = vpack.c.b16 %v168, %v164
  %v193 = vpack.c.b16 %v169, %v165
  %v194 = vpack.c.b16 %v170, %v166
  %v195 = vpack.c.b16 %v175, %v171
  %v196 = vpack.c.b16 %v176, %v172
  %v197 = vpack.c.b16 %v177, %v173
  %v198 = vpack.c.b16 %v178, %v174
  %v199 = vpack.c.b16 %v183, %v179
  %v200 = vpack.c.b16 %v184, %v180
  %v201 = vpack.c.b16 %v185, %v181
  %v202 = vpack.c.b16 %v186, %v182
  %vm219 = vcmask 523264
  %v221 = vsel %vm219, %v122, 0
  %223 = vmatprep.subr.bf16.mxu0 %v188
  %224 = vmatpush1.bf16.msra.mxu0 %v187
  %225 = vmatprep.subr.bf16.mxu0 %v192
  %226 = vmatpush1.bf16.msra.mxu0 %v191
  %227 = vmatprep.subr.bf16.mxu0 %v196
  %228 = vmatpush1.bf16.msra.mxu0 %v195
  %229 = vmatprep.subr.bf16.mxu0 %v200
  %230 = vmatpush1.bf16.msra.mxu0 %v199
  %231 = vmatprep.subr.bf16.mxu0 0
  %232 = vmatpush1.bf16.msra.mxu0 0
  %233 = vmatprep.subr.bf16.mxu0 0
  %234 = vmatpush1.bf16.msra.mxu0 0
  %235 = vmatprep.subr.bf16.mxu0 0
  %236 = vmatpush1.bf16.msra.mxu0 0
  %237 = vmatprep.subr.bf16.mxu0 0
  %238 = vmatpush1.bf16.msra.mxu0 0
  %239 = vmatprep.subr.bf16.mxu0 0
  %240 = vmatpush1.bf16.msra.mxu0 0
  %241 = vmatprep.subr.bf16.mxu0 0
  %242 = vmatpush1.bf16.msra.mxu0 0
  %243 = vmatprep.subr.bf16.mxu0 0
  %244 = vmatpush1.bf16.msra.mxu0 0
  %245 = vmatprep.subr.bf16.mxu0 0
  %246 = vmatpush1.bf16.msra.mxu0 0
  %247 = vmatprep.subr.bf16.mxu0 0
  %248 = vmatpush1.bf16.msra.mxu0 0
  %249 = vmatprep.subr.bf16.mxu0 0
  %250 = vmatpush1.bf16.msra.mxu0 0
  %251 = vmatprep.subr.bf16.mxu0 0
  %252 = vmatpush1.bf16.msra.mxu0 0
  %253 = vmatprep.subr.bf16.mxu0 0
  %254 = vmatpush1.bf16.msra.mxu0 0
  %255 = vmatprep.mubr.bf16.mxu0 0
  %256 = vmatmul.mubr.bf16.gmra.mrb[0].mxu0 %v221
  %v257 = vpop.f32.mrb[0].mxu0
  %v258 = vadd.f32 0.0, %v257
  %v259 = vpop.f32.mrb[0].mxu0
  %v260 = vadd.f32 0.0, %v259
  %v261 = vpop.f32.mrb[0].mxu0
  %v262 = vpop.f32.mrb[0].mxu0
  %263 = vdwg.mxu0
  %264 = vmatprep.subr.bf16.mxu0 %v190
  %265 = vmatpush1.bf16.msra.mxu0 %v189
  %266 = vmatprep.subr.bf16.mxu0 %v194
  %267 = vmatpush1.bf16.msra.mxu0 %v193
  %268 = vmatprep.subr.bf16.mxu0 %v198
  %269 = vmatpush1.bf16.msra.mxu0 %v197
  %270 = vmatprep.subr.bf16.mxu0 %v202
  %271 = vmatpush1.bf16.msra.mxu0 %v201
  %272 = vmatprep.subr.bf16.mxu0 0
  %273 = vmatpush1.bf16.msra.mxu0 0
  %274 = vmatprep.subr.bf16.mxu0 0
  %275 = vmatpush1.bf16.msra.mxu0 0
  %276 = vmatprep.subr.bf16.mxu0 0
  %277 = vmatpush1.bf16.msra.mxu0 0
  %278 = vmatprep.subr.bf16.mxu0 0
  %279 = vmatpush1.bf16.msra.mxu0 0
  %280 = vmatprep.subr.bf16.mxu0 0
  %281 = vmatpush1.bf16.msra.mxu0 0
  %282 = vmatprep.subr.bf16.mxu0 0
  %283 = vmatpush1.bf16.msra.mxu0 0
  %284 = vmatprep.subr.bf16.mxu0 0
  %285 = vmatpush1.bf16.msra.mxu0 0
  %286 = vmatprep.subr.bf16.mxu0 0
  %287 = vmatpush1.bf16.msra.mxu0 0
  %288 = vmatprep.subr.bf16.mxu0 0
  %289 = vmatpush1.bf16.msra.mxu0 0
  %290 = vmatprep.subr.bf16.mxu0 0
  %291 = vmatpush1.bf16.msra.mxu0 0
  %292 = vmatprep.subr.bf16.mxu0 0
  %293 = vmatpush1.bf16.msra.mxu0 0
  %294 = vmatprep.subr.bf16.mxu0 0
  %295 = vmatpush1.bf16.msra.mxu0 0
  %296 = vmatprep.mubr.bf16.mxu0 0
  %297 = vmatmul.mubr.bf16.gmra.mrb[0].mxu0 %v221
  %v298 = vpop.f32.mrb[0].mxu0
  %v299 = vadd.f32 0.0, %v298
  %v300 = vpop.f32.mrb[0].mxu0
  %v301 = vadd.f32 0.0, %v300
  %v302 = vpop.f32.mrb[0].mxu0
  %v303 = vpop.f32.mrb[0].mxu0
  %304 = vdwg.mxu0
  %v313 = vunpack.c.l.b16 %v113
  %v314 = vunpack.c.h.b16 %v113
  %v315 = vunpack.c.l.b16 %v114
  %v316 = vunpack.c.h.b16 %v114
  %v317 = vunpack.c.l.b16 %v115
  %v318 = vunpack.c.h.b16 %v115
  %v319 = vunpack.c.l.b16 %v116
  %v320 = vunpack.c.h.b16 %v116
  %v321 = vunpack.c.l.b16 %v117
  %v322 = vunpack.c.h.b16 %v117
  %v323 = vunpack.c.l.b16 %v118
  %v324 = vunpack.c.h.b16 %v118
  %v325 = vunpack.c.l.b16 %v119
  %v326 = vunpack.c.h.b16 %v119
  %v327 = vunpack.c.l.b16 %v120
  %v328 = vunpack.c.h.b16 %v120
  %v329 = vpack.c.b16 %v317, %v313
  %v330 = vpack.c.b16 %v318, %v314
  %v331 = vpack.c.b16 %v319, %v315
  %v332 = vpack.c.b16 %v320, %v316
  %v333 = vpack.c.b16 %v325, %v321
  %v334 = vpack.c.b16 %v326, %v322
  %v335 = vpack.c.b16 %v327, %v323
  %v336 = vpack.c.b16 %v328, %v324
  %v346 = vsel %vm36, %v112, 0
  %348 = vmatprep.subr.bf16.mxu0 %v330
  %349 = vmatpush1.bf16.msra.mxu0 %v329
  %350 = vmatprep.subr.bf16.mxu0 %v334
  %351 = vmatpush1.bf16.msra.mxu0 %v333
  %352 = vmatprep.subr.bf16.mxu0 0
  %353 = vmatpush1.bf16.msra.mxu0 0
  %354 = vmatprep.subr.bf16.mxu0 0
  %355 = vmatpush1.bf16.msra.mxu0 0
  %356 = vmatprep.subr.bf16.mxu0 0
  %357 = vmatpush1.bf16.msra.mxu0 0
  %358 = vmatprep.subr.bf16.mxu0 0
  %359 = vmatpush1.bf16.msra.mxu0 0
  %360 = vmatprep.subr.bf16.mxu0 0
  %361 = vmatpush1.bf16.msra.mxu0 0
  %362 = vmatprep.subr.bf16.mxu0 0
  %363 = vmatpush1.bf16.msra.mxu0 0
  %364 = vmatprep.subr.bf16.mxu0 0
  %365 = vmatpush1.bf16.msra.mxu0 0
  %366 = vmatprep.subr.bf16.mxu0 0
  %367 = vmatpush1.bf16.msra.mxu0 0
  %368 = vmatprep.subr.bf16.mxu0 0
  %369 = vmatpush1.bf16.msra.mxu0 0
  %370 = vmatprep.subr.bf16.mxu0 0
  %371 = vmatpush1.bf16.msra.mxu0 0
  %372 = vmatprep.subr.bf16.mxu0 0
  %373 = vmatpush1.bf16.msra.mxu0 0
  %374 = vmatprep.subr.bf16.mxu0 0
  %375 = vmatpush1.bf16.msra.mxu0 0
  %376 = vmatprep.subr.bf16.mxu0 0
  %377 = vmatpush1.bf16.msra.mxu0 0
  %378 = vmatprep.subr.bf16.mxu0 0
  %379 = vmatpush1.bf16.msra.mxu0 0
  %380 = vmatprep.mubr.bf16.mxu0 0
  %381 = vmatmul.mubr.bf16.gmra.mrb[0].mxu0 %v346
  %v382 = vpop.f32.mrb[0].mxu0
  %v383 = vadd.f32 %v258, %v382
  %v384 = vpop.f32.mrb[0].mxu0
  %v385 = vadd.f32 %v260, %v384
  %v386 = vpop.f32.mrb[0].mxu0
  %v387 = vpop.f32.mrb[0].mxu0
  %388 = vdwg.mxu0
  %389 = vmatprep.subr.bf16.mxu0 %v332
  %390 = vmatpush1.bf16.msra.mxu0 %v331
  %391 = vmatprep.subr.bf16.mxu0 %v336
  %392 = vmatpush1.bf16.msra.mxu0 %v335
  %393 = vmatprep.subr.bf16.mxu0 0
  %394 = vmatpush1.bf16.msra.mxu0 0
  %395 = vmatprep.subr.bf16.mxu0 0
  %396 = vmatpush1.bf16.msra.mxu0 0
  %397 = vmatprep.subr.bf16.mxu0 0
  %398 = vmatpush1.bf16.msra.mxu0 0
  %399 = vmatprep.subr.bf16.mxu0 0
  %400 = vmatpush1.bf16.msra.mxu0 0
  %401 = vmatprep.subr.bf16.mxu0 0
  %402 = vmatpush1.bf16.msra.mxu0 0
  %403 = vmatprep.subr.bf16.mxu0 0
  %404 = vmatpush1.bf16.msra.mxu0 0
  %405 = vmatprep.subr.bf16.mxu0 0
  %406 = vmatpush1.bf16.msra.mxu0 0
  %407 = vmatprep.subr.bf16.mxu0 0
  %408 = vmatpush1.bf16.msra.mxu0 0
  %409 = vmatprep.subr.bf16.mxu0 0
  %410 = vmatpush1.bf16.msra.mxu0 0
  %411 = vmatprep.subr.bf16.mxu0 0
  %412 = vmatpush1.bf16.msra.mxu0 0
  %413 = vmatprep.subr.bf16.mxu0 0
  %414 = vmatpush1.bf16.msra.mxu0 0
  %415 = vmatprep.subr.bf16.mxu0 0
  %416 = vmatpush1.bf16.msra.mxu0 0
  %417 = vmatprep.subr.bf16.mxu0 0
  %418 = vmatpush1.bf16.msra.mxu0 0
  %419 = vmatprep.subr.bf16.mxu0 0
  %420 = vmatpush1.bf16.msra.mxu0 0
  %421 = vmatprep.mubr.bf16.mxu0 0
  %422 = vmatmul.mubr.bf16.gmra.mrb[0].mxu0 %v346
  %v423 = vpop.f32.mrb[0].mxu0
  %v424 = vadd.f32 %v299, %v423
  %v425 = vpop.f32.mrb[0].mxu0
  %v426 = vadd.f32 %v301, %v425
  %v427 = vpop.f32.mrb[0].mxu0
  %v428 = vpop.f32.mrb[0].mxu0
  %429 = vdwg.mxu0
  %v431 = vlaneseq
  %v432 = vshrl.u32 %v431, 7
  %v433 = vsub.s32 0, %v432
  %v434 = vrot.slane %v111, %v433
  %v435 = vlaneseq
  %v436 = vshrl.u32 %v435, 7
  %v437 = vsub.s32 1, %v436
  %v438 = vrot.slane %v111, %v437
  %v439 = vlaneseq
  %v440 = vshrl.u32 %v439, 7
  %v441 = vsub.s32 2, %v440
  %v442 = vrot.slane %v111, %v441
  %v443 = vlaneseq
  %v444 = vshrl.u32 %v443, 7
  %v445 = vsub.s32 3, %v444
  %v446 = vrot.slane %v111, %v445
  %v451 = vadd.f32 %v383, %v434
  %v452 = vadd.f32 %v385, %v438
  %v453 = vadd.f32 %v424, %v442
  %v454 = vadd.f32 %v426, %v446
  %v455 = vmax.f32 %v451, 0.0
  %v456 = vmax.f32 %v452, 0.0
  %v457 = vmax.f32 %v453, 0.0
  %v458 = vmax.f32 %v454, 0.0
  %v459 = vld [vmem:[%s5 + $0x5] sm:$0x1]
  %v460 = vpack.c.bf16 %v455, %v455
  %v461 = vpack.c.bf16 %v456, %v456
  %v462 = vpack.c.bf16 %v457, %v457
  %v463 = vpack.c.bf16 %v458, %v458
  %v464 = vld [vmem:[%s4] sm:$0xf]
  %v465 = vld [vmem:[%s4 + $0x4] sm:$0xf]
  %v466 = vld [vmem:[%s4 + $0x8] sm:$0xf]
  %v467 = vld [vmem:[%s4 + $0xc] sm:$0xf]
  %v468 = vld [vmem:[%s4 + $0x10] sm:$0xf]
  %v469 = vld [vmem:[%s4 + $0x14] sm:$0xf]
  %v470 = vld [vmem:[%s4 + $0x18] sm:$0xf]
  %v471 = vld [vmem:[%s4 + $0x1c] sm:$0xf]
  %v472 = vld [vmem:[%s4 + $0x20] sm:$0xf]
  %v473 = vld [vmem:[%s4 + $0x24] sm:$0xf]
  %v474 = vld [vmem:[%s4 + $0x28] sm:$0xf]
  %v475 = vld [vmem:[%s4 + $0x2c] sm:$0xf]
  %v476 = vld [vmem:[%s4 + $0x30] sm:$0xf]
  %v477 = vld [vmem:[%s4 + $0x34] sm:$0xf]
  %v478 = vld [vmem:[%s4 + $0x38] sm:$0xf]
  %v479 = vld [vmem:[%s4 + $0x3c] sm:$0xf]
  %v480 = vld [vmem:[%s4 + $0x40] sm:$0xf]
  %v481 = vld [vmem:[%s4 + $0x44] sm:$0xf]
  %v482 = vld [vmem:[%s4 + $0x48] sm:$0xf]
  %v483 = vld [vmem:[%s4 + $0x4c] sm:$0xf]
  %v484 = vld [vmem:[%s4 + $0x50] sm:$0xf]
  %v485 = vld [vmem:[%s4 + $0x54] sm:$0xf]
  %v486 = vld [vmem:[%s4 + $0x58] sm:$0xf]
  %v487 = vld [vmem:[%s4 + $0x5c] sm:$0xf]
  %v488 = vld [vmem:[%s4 + $0x60] sm:$0xf]
  %v489 = vld [vmem:[%s4 + $0x64] sm:$0xf]
  %v490 = vld [vmem:[%s4 + $0x68] sm:$0xf]
  %v491 = vld [vmem:[%s4 + $0x6c] sm:$0xf]
  %v492 = vld [vmem:[%s4 + $0x70] sm:$0xf]
  %v493 = vld [vmem:[%s4 + $0x74] sm:$0xf]
  %v494 = vld [vmem:[%s4 + $0x78] sm:$0xf]
  %v495 = vld [vmem:[%s4 + $0x7c] sm:$0xf]
  %v496 = vld [vmem:[%s4 + $0x80] sm:$0xf]
  %v497 = vld [vmem:[%s4 + $0x84] sm:$0xf]
  %v498 = vld [vmem:[%s4 + $0x88] sm:$0xf]
  %v499 = vld [vmem:[%s4 + $0x8c] sm:$0xf]
  %v500 = vld [vmem:[%s4 + $0x90] sm:$0xf]
  %v501 = vld [vmem:[%s4 + $0x94] sm:$0xf]
  %v502 = vld [vmem:[%s4 + $0x98] sm:$0xf]
  %v503 = vld [vmem:[%s4 + $0x9c] sm:$0xf]
  %v504 = vld [vmem:[%s4 + $0xa0] sm:$0xf]
  %v505 = vld [vmem:[%s4 + $0xa4] sm:$0xf]
  %v506 = vld [vmem:[%s4 + $0xa8] sm:$0xf]
  %v507 = vld [vmem:[%s4 + $0xac] sm:$0xf]
  %v508 = vld [vmem:[%s4 + $0xb0] sm:$0xf]
  %v509 = vld [vmem:[%s4 + $0xb4] sm:$0xf]
  %v510 = vld [vmem:[%s4 + $0xb8] sm:$0xf]
  %v511 = vld [vmem:[%s4 + $0xbc] sm:$0xf]
  %v512 = vld [vmem:[%s4 + $0xc0] sm:$0xf]
  %v513 = vld [vmem:[%s4 + $0xc4] sm:$0xf]
  %v514 = vld [vmem:[%s4 + $0xc8] sm:$0xf]
  %v515 = vld [vmem:[%s4 + $0xcc] sm:$0xf]
  %v516 = vld [vmem:[%s4 + $0xd0] sm:$0xf]
  %v517 = vld [vmem:[%s4 + $0xd4] sm:$0xf]
  %v518 = vld [vmem:[%s4 + $0xd8] sm:$0xf]
  %v519 = vld [vmem:[%s4 + $0xdc] sm:$0xf]
  %v520 = vld [vmem:[%s4 + $0xe0] sm:$0xf]
  %v521 = vld [vmem:[%s4 + $0xe4] sm:$0xf]
  %v522 = vld [vmem:[%s4 + $0xe8] sm:$0xf]
  %v523 = vld [vmem:[%s4 + $0xec] sm:$0xf]
  %v524 = vld [vmem:[%s4 + $0xf0] sm:$0xf]
  %v525 = vld [vmem:[%s4 + $0xf4] sm:$0xf]
  %v526 = vld [vmem:[%s4 + $0xf8] sm:$0xf]
  %v527 = vld [vmem:[%s4 + $0xfc] sm:$0xf]
  %v529 = vlaneseq
  %v530 = vshrl.u32 %v529, 7
  %v531 = vsub.s32 0, %v530
  %v532 = vrot.slane %v459, %v531
  %v598 = vunpack.c.l.b16 %v464
  %v599 = vunpack.c.l.b16 %v465
  %v600 = vunpack.c.l.b16 %v466
  %v601 = vunpack.c.l.b16 %v467
  %v602 = vunpack.c.l.b16 %v468
  %v603 = vunpack.c.l.b16 %v469
  %v604 = vunpack.c.l.b16 %v470
  %v605 = vunpack.c.l.b16 %v471
  %v606 = vunpack.c.l.b16 %v472
  %v607 = vunpack.c.l.b16 %v473
  %v608 = vunpack.c.l.b16 %v474
  %v609 = vunpack.c.l.b16 %v475
  %v610 = vunpack.c.l.b16 %v476
  %v611 = vunpack.c.l.b16 %v477
  %v612 = vunpack.c.l.b16 %v478
  %v613 = vunpack.c.l.b16 %v479
  %v614 = vunpack.c.l.b16 %v480
  %v615 = vunpack.c.l.b16 %v481
  %v616 = vunpack.c.l.b16 %v482
  %v617 = vunpack.c.l.b16 %v483
  %v618 = vunpack.c.l.b16 %v484
  %v619 = vunpack.c.l.b16 %v485
  %v620 = vunpack.c.l.b16 %v486
  %v621 = vunpack.c.l.b16 %v487
  %v622 = vunpack.c.l.b16 %v488
  %v623 = vunpack.c.l.b16 %v489
  %v624 = vunpack.c.l.b16 %v490
  %v625 = vunpack.c.l.b16 %v491
  %v626 = vunpack.c.l.b16 %v492
  %v627 = vunpack.c.l.b16 %v493
  %v628 = vunpack.c.l.b16 %v494
  %v629 = vunpack.c.l.b16 %v495
  %v630 = vunpack.c.l.b16 %v496
  %v631 = vunpack.c.l.b16 %v497
  %v632 = vunpack.c.l.b16 %v498
  %v633 = vunpack.c.l.b16 %v499
  %v634 = vunpack.c.l.b16 %v500
  %v635 = vunpack.c.l.b16 %v501
  %v636 = vunpack.c.l.b16 %v502
  %v637 = vunpack.c.l.b16 %v503
  %v638 = vunpack.c.l.b16 %v504
  %v639 = vunpack.c.l.b16 %v505
  %v640 = vunpack.c.l.b16 %v506
  %v641 = vunpack.c.l.b16 %v507
  %v642 = vunpack.c.l.b16 %v508
  %v643 = vunpack.c.l.b16 %v509
  %v644 = vunpack.c.l.b16 %v510
  %v645 = vunpack.c.l.b16 %v511
  %v646 = vunpack.c.l.b16 %v512
  %v647 = vunpack.c.l.b16 %v513
  %v648 = vunpack.c.l.b16 %v514
  %v649 = vunpack.c.l.b16 %v515
  %v650 = vunpack.c.l.b16 %v516
  %v651 = vunpack.c.l.b16 %v517
  %v652 = vunpack.c.l.b16 %v518
  %v653 = vunpack.c.l.b16 %v519
  %v654 = vunpack.c.l.b16 %v520
  %v655 = vunpack.c.l.b16 %v521
  %v656 = vunpack.c.l.b16 %v522
  %v657 = vunpack.c.l.b16 %v523
  %v658 = vunpack.c.l.b16 %v524
  %v659 = vunpack.c.l.b16 %v525
  %v660 = vunpack.c.l.b16 %v526
  %v661 = vunpack.c.l.b16 %v527
  %v662 = vpack.c.b16 %v599, %v598
  %v663 = vpack.c.b16 %v601, %v600
  %v664 = vpack.c.b16 %v603, %v602
  %v665 = vpack.c.b16 %v605, %v604
  %v666 = vpack.c.b16 %v607, %v606
  %v667 = vpack.c.b16 %v609, %v608
  %v668 = vpack.c.b16 %v611, %v610
  %v669 = vpack.c.b16 %v613, %v612
  %v670 = vpack.c.b16 %v615, %v614
  %v671 = vpack.c.b16 %v617, %v616
  %v672 = vpack.c.b16 %v619, %v618
  %v673 = vpack.c.b16 %v621, %v620
  %v674 = vpack.c.b16 %v623, %v622
  %v675 = vpack.c.b16 %v625, %v624
  %v676 = vpack.c.b16 %v627, %v626
  %v677 = vpack.c.b16 %v629, %v628
  %v678 = vpack.c.b16 %v631, %v630
  %v679 = vpack.c.b16 %v633, %v632
  %v680 = vpack.c.b16 %v635, %v634
  %v681 = vpack.c.b16 %v637, %v636
  %v682 = vpack.c.b16 %v639, %v638
  %v683 = vpack.c.b16 %v641, %v640
  %v684 = vpack.c.b16 %v643, %v642
  %v685 = vpack.c.b16 %v645, %v644
  %v686 = vpack.c.b16 %v647, %v646
  %v687 = vpack.c.b16 %v649, %v648
  %v688 = vpack.c.b16 %v651, %v650
  %v689 = vpack.c.b16 %v653, %v652
  %v690 = vpack.c.b16 %v655, %v654
  %v691 = vpack.c.b16 %v657, %v656
  %v692 = vpack.c.b16 %v659, %v658
  %v693 = vpack.c.b16 %v661, %v660
  %726 = vmatprep.subr.bf16.mxu0 0
  %727 = vmatpush1.bf16.msra.mxu0 %v662
  %728 = vmatprep.subr.bf16.mxu0 0
  %729 = vmatpush1.bf16.msra.mxu0 %v663
  %730 = vmatprep.subr.bf16.mxu0 0
  %731 = vmatpush1.bf16.msra.mxu0 %v664
  %732 = vmatprep.subr.bf16.mxu0 0
  %733 = vmatpush1.bf16.msra.mxu0 %v665
  %734 = vmatprep.subr.bf16.mxu0 0
  %735 = vmatpush1.bf16.msra.mxu0 %v666
  %736 = vmatprep.subr.bf16.mxu0 0
  %737 = vmatpush1.bf16.msra.mxu0 %v667
  %738 = vmatprep.subr.bf16.mxu0 0
  %739 = vmatpush1.bf16.msra.mxu0 %v668
  %740 = vmatprep.subr.bf16.mxu0 0
  %741 = vmatpush1.bf16.msra.mxu0 %v669
  %742 = vmatprep.subr.bf16.mxu0 0
  %743 = vmatpush1.bf16.msra.mxu0 %v670
  %744 = vmatprep.subr.bf16.mxu0 0
  %745 = vmatpush1.bf16.msra.mxu0 %v671
  %746 = vmatprep.subr.bf16.mxu0 0
  %747 = vmatpush1.bf16.msra.mxu0 %v672
  %748 = vmatprep.subr.bf16.mxu0 0
  %749 = vmatpush1.bf16.msra.mxu0 %v673
  %750 = vmatprep.subr.bf16.mxu0 0
  %751 = vmatpush1.bf16.msra.mxu0 %v674
  %752 = vmatprep.subr.bf16.mxu0 0
  %753 = vmatpush1.bf16.msra.mxu0 %v675
  %754 = vmatprep.subr.bf16.mxu0 0
  %755 = vmatpush1.bf16.msra.mxu0 %v676
  %756 = vmatprep.subr.bf16.mxu0 0
  %757 = vmatpush1.bf16.msra.mxu0 %v677
  %758 = vmatprep.mubr.bf16.mxu0 %v461
  %759 = vmatmul.mubr.bf16.gmra.mrb[0].mxu0 %v460
  %v760 = vpop.f32.mrb[0].mxu0
  %v761 = vadd.f32 %v532, %v760
  %v762 = vpop.f32.mrb[0].mxu0
  %v763 = vpop.f32.mrb[0].mxu0
  %v764 = vpop.f32.mrb[0].mxu0
  %765 = vdwg.mxu0
  %766 = vmatprep.subr.bf16.mxu0 0
  %767 = vmatpush1.bf16.msra.mxu0 %v678
  %768 = vmatprep.subr.bf16.mxu0 0
  %769 = vmatpush1.bf16.msra.mxu0 %v679
  %770 = vmatprep.subr.bf16.mxu0 0
  %771 = vmatpush1.bf16.msra.mxu0 %v680
  %772 = vmatprep.subr.bf16.mxu0 0
  %773 = vmatpush1.bf16.msra.mxu0 %v681
  %774 = vmatprep.subr.bf16.mxu0 0
  %775 = vmatpush1.bf16.msra.mxu0 %v682
  %776 = vmatprep.subr.bf16.mxu0 0
  %777 = vmatpush1.bf16.msra.mxu0 %v683
  %778 = vmatprep.subr.bf16.mxu0 0
  %779 = vmatpush1.bf16.msra.mxu0 %v684
  %780 = vmatprep.subr.bf16.mxu0 0
  %781 = vmatpush1.bf16.msra.mxu0 %v685
  %782 = vmatprep.subr.bf16.mxu0 0
  %783 = vmatpush1.bf16.msra.mxu0 %v686
  %784 = vmatprep.subr.bf16.mxu0 0
  %785 = vmatpush1.bf16.msra.mxu0 %v687
  %786 = vmatprep.subr.bf16.mxu0 0
  %787 = vmatpush1.bf16.msra.mxu0 %v688
  %788 = vmatprep.subr.bf16.mxu0 0
  %789 = vmatpush1.bf16.msra.mxu0 %v689
  %790 = vmatprep.subr.bf16.mxu0 0
  %791 = vmatpush1.bf16.msra.mxu0 %v690
  %792 = vmatprep.subr.bf16.mxu0 0
  %793 = vmatpush1.bf16.msra.mxu0 %v691
  %794 = vmatprep.subr.bf16.mxu0 0
  %795 = vmatpush1.bf16.msra.mxu0 %v692
  %796 = vmatprep.subr.bf16.mxu0 0
  %797 = vmatpush1.bf16.msra.mxu0 %v693
  %798 = vmatprep.mubr.bf16.mxu0 %v463
  %799 = vmatmul.mubr.bf16.gmra.mrb[0].mxu0 %v462
  %v800 = vpop.f32.mrb[0].mxu0
  %v801 = vadd.f32 %v761, %v800
  %v802 = vpop.f32.mrb[0].mxu0
  %v803 = vpop.f32.mrb[0].mxu0
  %v804 = vpop.f32.mrb[0].mxu0
  %805 = vdwg.mxu0
  %806 = vst [vmem:[%s6] sm:$0xff] %v801
  // Predicated region
  $region26: #{vqa_forward.1} parent=0 // pred_check
    _
  $region27: #{vqa_forward.1} parent=0 // pred_check_branch
    %808 = sbr.rel (0) target = $region29
  $region28: #{vqa_forward.1} parent=0 // pred_region
    _
  $region29: #{vqa_forward.1} parent=0 // pred_fallthru
    _
  // Predicated region
  $region30: #{vqa_forward.1} parent=0 // pred_check
    _
  $region31: #{vqa_forward.1} parent=0 // pred_check_branch
    %810 = sbr.rel (0) target = $region33
  $region32: #{vqa_forward.1} parent=0 // pred_region
    _
  $region33: #{vqa_forward.1} parent=0 // pred_fallthru
    _

</llo_original>
